<compile_context>
chip_gen: v7x
topology: tpu7x:2x2x1
jax: 0.10.0
libtpu: 0.0.40
codegen_flags: <defaults>
</compile_context>

<pallas_src>
import functools

import jax
import jax.numpy as jnp
from jax.experimental import pallas as pl
from jax.experimental.pallas import tpu as pltpu

_LANE = 128
_SUBLANE = 8


def _round_up(n, m):
    return ((n + m - 1) // m) * m


def _mlp_kernel(x_ref, w1_ref, b1_ref, w2_ref, b2_ref, o_ref, *, compute_dtype):
    # fc1 + ReLU + fc2 for one batch tile, entirely in VMEM on the MXU/VPU.
    x = x_ref[...]
    w1 = w1_ref[...]
    w2 = w2_ref[...]
    if compute_dtype is not None:
        # In-kernel cast: MXU-only speedup, adds no HBM traffic.
        x = x.astype(compute_dtype)
        w1 = w1.astype(compute_dtype)
        w2 = w2.astype(compute_dtype)
    h = jnp.dot(x, w1, preferred_element_type=jnp.float32) + b1_ref[...]
    h = jnp.maximum(h, 0.0)
    h = h.astype(w2.dtype)
    out = jnp.dot(h, w2, preferred_element_type=jnp.float32) + b2_ref[...]
    o_ref[...] = out.astype(o_ref.dtype)


def pad_params(w1, b1, w2, b2):
    """One-time (init-time) padding of the hidden dim up to a full 128-lane vreg.

    Exact: ReLU(0) = 0 and the padded rows of w2 are zero, so padded hidden
    columns contribute nothing to the output.
    """
    F, H = w1.shape
    O = w2.shape[1]
    Hp = _round_up(max(H, _LANE), _LANE)
    w1p = jnp.zeros((F, Hp), w1.dtype).at[:, :H].set(w1)
    b1p = jnp.zeros((1, Hp), b1.dtype).at[:, :H].set(b1)
    w2p = jnp.zeros((Hp, O), w2.dtype).at[:H, :].set(w2)
    b2p = b2.reshape(1, O)
    return w1p, b1p, w2p, b2p


@functools.partial(jax.jit, static_argnames=("block_b", "compute_dtype"))
def linear_model_forward(x, w1p, b1p, w2p, b2p, *, block_b=2048, compute_dtype=None):
    """x: [B, F]; w1p: [F, Hp]; b1p: [1, Hp]; w2p: [Hp, O]; b2p: [1, O] -> [B, O]."""
    B, F = x.shape
    Hp = w1p.shape[1]
    O = w2p.shape[1]

    # Batch tile: multiple of 8 sublanes, capped at block_b.  When the batch
    # is big enough, keep at least 2 grid steps so v7x's two TensorCores both
    # get work (harmless on v5e/v6e); the last block may be ragged.
    TB = min(block_b, _round_up(B, _SUBLANE))
    if B >= 2 * _SUBLANE:
        TB = min(TB, _round_up(pl.cdiv(B, 2), _SUBLANE))
    TB = _round_up(max(TB, _SUBLANE), _SUBLANE)

    grid = (pl.cdiv(B, TB),)

    kernel = functools.partial(_mlp_kernel, compute_dtype=compute_dtype)

    return pl.pallas_call(
        kernel,
        out_shape=jax.ShapeDtypeStruct((B, O), x.dtype),
        grid=grid,
        in_specs=[
            pl.BlockSpec((TB, F), lambda i: (i, 0)),   # x tile, streamed per step
            pl.BlockSpec((F, Hp), lambda i: (0, 0)),   # w1 resident in VMEM
            pl.BlockSpec((1, Hp), lambda i: (0, 0)),   # b1 resident
            pl.BlockSpec((Hp, O), lambda i: (0, 0)),   # w2 resident
            pl.BlockSpec((1, O), lambda i: (0, 0)),    # b2 resident
        ],
        # Output at its true width (last dim == full array dim): no padded
        # writeback, no wrapper slice pass.
        out_specs=pl.BlockSpec((TB, O), lambda i: (i, 0)),
        compiler_params=pltpu.CompilerParams(
            dimension_semantics=("parallel",)),
    )(x, w1p, b1p, w2p, b2p)


def init_params(key, n_feature=192, h_dim=3 * 32, n_output=10, dtype=jnp.float32):
    """Deterministic init mimicking PyTorch nn.Linear default (U[-1/sqrt(fan_in), +])."""
    k1, k2, k3, k4 = jax.random.split(key, 4)
    bound1 = 1.0 / jnp.sqrt(jnp.array(n_feature, dtype))
    bound2 = 1.0 / jnp.sqrt(jnp.array(h_dim, dtype))
    w1 = jax.random.uniform(k1, (n_feature, h_dim), dtype, -bound1, bound1)
    b1 = jax.random.uniform(k2, (1, h_dim), dtype, -bound1, bound1)
    w2 = jax.random.uniform(k3, (h_dim, n_output), dtype, -bound2, bound2)
    b2 = jax.random.uniform(k4, (1, n_output), dtype, -bound2, bound2)
    return w1, b1, w2, b2


if __name__ == "__main__":
    key = jax.random.PRNGKey(0)
    kx, kp = jax.random.split(key)

    B, N_FEATURE, H_DIM, N_OUTPUT = 8, 192, 3 * 32, 10
    x = jax.random.normal(kx, (B, N_FEATURE), jnp.float32)
    w1, b1, w2, b2 = init_params(kp, N_FEATURE, H_DIM, N_OUTPUT)
    params = pad_params(w1, b1, w2, b2)   # padded once, reused every call

    # Small batch (single grid step).
    out = jax.block_until_ready(linear_model_forward(x, *params))
    ref = jnp.maximum(x @ w1 + b1, 0.0) @ w2 + b2
    assert out.shape == (B, N_OUTPUT)
    assert jnp.allclose(out, ref, atol=1e-5, rtol=1e-5), "mismatch vs reference"

    # Larger, non-multiple-of-8 batch: exercises the multi-step grid and the
    # ragged (masked) last block -- no explicit batch padding anywhere.
    B2 = 203
    x2 = jax.random.normal(jax.random.PRNGKey(1), (B2, N_FEATURE), jnp.float32)
    out2 = jax.block_until_ready(linear_model_forward(x2, *params, block_b=64))
    ref2 = jnp.maximum(x2 @ w1 + b1, 0.0) @ w2 + b2
    assert out2.shape == (B2, N_OUTPUT)
    assert jnp.allclose(out2, ref2, atol=1e-5, rtol=1e-5), "tiled mismatch vs reference"

    # bf16 in-kernel MXU fast path (coverage only; looser numerics by design,
    # so no tight allclose here).
    out3 = jax.block_until_ready(
        linear_model_forward(x2, *params, compute_dtype=jnp.bfloat16))
    assert out3.shape == (B2, N_OUTPUT)
    assert bool(jnp.all(jnp.isfinite(out3)))

    print("KERNEL_OK")
</pallas_src>

<mosaic_0001>
module attributes {stable_mosaic.version = 11 : i64} {
  func.func @_mlp_kernel(%arg0: i32, %arg1: memref<8x192xf32, #tpu.memory_space<vmem>>, %arg2: memref<192x128xf32, #tpu.memory_space<vmem>>, %arg3: memref<1x128xf32, #tpu.memory_space<vmem>>, %arg4: memref<128x10xf32, #tpu.memory_space<vmem>>, %arg5: memref<1x10xf32, #tpu.memory_space<vmem>>, %arg6: memref<8x10xf32, #tpu.memory_space<vmem>>) attributes {dimension_semantics = [#tpu.dimension_semantics<parallel>], iteration_bounds = array<i64: 1>, scalar_prefetch = 0 : i64, scratch_operands = 0 : i64, tpu.core_type = #tpu.core_type<tc>, window_params = [{transform_indices = @transform_0, window_bounds = array<i64: 8, 192>}, {pipeline_mode = #tpu.pipeline_mode<synchronous>, transform_indices = @transform_1, window_bounds = array<i64: 192, 128>}, {pipeline_mode = #tpu.pipeline_mode<synchronous>, transform_indices = @transform_2, window_bounds = array<i64: 1, 128>}, {pipeline_mode = #tpu.pipeline_mode<synchronous>, transform_indices = @transform_3, window_bounds = array<i64: 128, 10>}, {pipeline_mode = #tpu.pipeline_mode<synchronous>, transform_indices = @transform_4, window_bounds = array<i64: 1, 10>}, {transform_indices = @transform_5, window_bounds = array<i64: 8, 10>}]} {
    %c0 = arith.constant 0 : index
    %c0_0 = arith.constant 0 : index
    %0 = vector.load %arg1[%c0, %c0_0] : memref<8x192xf32, #tpu.memory_space<vmem>>, vector<8x192xf32>
    %c0_1 = arith.constant 0 : index
    %c0_2 = arith.constant 0 : index
    %1 = vector.load %arg2[%c0_1, %c0_2] : memref<192x128xf32, #tpu.memory_space<vmem>>, vector<192x128xf32>
    %c0_3 = arith.constant 0 : index
    %c0_4 = arith.constant 0 : index
    %2 = vector.load %arg4[%c0_3, %c0_4] : memref<128x10xf32, #tpu.memory_space<vmem>>, vector<128x10xf32>
    %cst = arith.constant dense<0.000000e+00> : vector<8x128xf32>
    %3 = tpu.matmul %0, %1, %cst {dimension_numbers = #tpu.dot_dimension_numbers<[1], [0], [0], [1], [0, 0, 1, 1], [], []>} : vector<8x192xf32>, vector<192x128xf32>, vector<8x128xf32> -> vector<8x128xf32>
    %c0_5 = arith.constant 0 : index
    %c0_6 = arith.constant 0 : index
    %4 = vector.load %arg3[%c0_5, %c0_6] : memref<1x128xf32, #tpu.memory_space<vmem>>, vector<1x128xf32>
    %5 = vector.broadcast %4 : vector<1x128xf32> to vector<8x128xf32>
    %6 = arith.addf %3, %5 : vector<8x128xf32>
    %cst_7 = arith.constant 0.000000e+00 : f32
    %7 = vector.broadcast %cst_7 : f32 to vector<8x128xf32>
    %8 = arith.maximumf %6, %7 : vector<8x128xf32>
    %cst_8 = arith.constant dense<0.000000e+00> : vector<8x10xf32>
    %9 = tpu.matmul %8, %2, %cst_8 {dimension_numbers = #tpu.dot_dimension_numbers<[1], [0], [0], [1], [0, 0, 1, 1], [], []>} : vector<8x128xf32>, vector<128x10xf32>, vector<8x10xf32> -> vector<8x10xf32>
    %c0_9 = arith.constant 0 : index
    %c0_10 = arith.constant 0 : index
    %10 = vector.load %arg5[%c0_9, %c0_10] : memref<1x10xf32, #tpu.memory_space<vmem>>, vector<1x10xf32>
    %11 = vector.broadcast %10 : vector<1x10xf32> to vector<8x10xf32>
    %12 = arith.addf %9, %11 : vector<8x10xf32>
    %c0_11 = arith.constant 0 : index
    %c0_12 = arith.constant 0 : index
    %13 = vector.load %arg6[%c0_11, %c0_12] : memref<8x10xf32, #tpu.memory_space<vmem>>, vector<8x10xf32>
    tpu.vector_store %arg6[%c0_11, %c0_12], %12 {strides = array<i32>} : memref<8x10xf32, #tpu.memory_space<vmem>>, vector<8x10xf32>,
    return
  }
  func.func @transform_0(%arg0: i32) -> (i32, i32) {
    %c0_i32 = arith.constant 0 : i32
    %c0_i32_0 = arith.constant 0 : i32
    return %arg0, %c0_i32 : i32, i32
  }
  func.func @transform_1(%arg0: i32) -> (i32, i32) {
    %c0_i32 = arith.constant 0 : i32
    %c0_i32_0 = arith.constant 0 : i32
    %c0_i32_1 = arith.constant 0 : i32
    return %c0_i32, %c0_i32_0 : i32, i32
  }
  func.func @transform_2(%arg0: i32) -> (i32, i32) {
    %c0_i32 = arith.constant 0 : i32
    %c0_i32_0 = arith.constant 0 : i32
    %c0_i32_1 = arith.constant 0 : i32
    return %c0_i32, %c0_i32_0 : i32, i32
  }
  func.func @transform_3(%arg0: i32) -> (i32, i32) {
    %c0_i32 = arith.constant 0 : i32
    %c0_i32_0 = arith.constant 0 : i32
    %c0_i32_1 = arith.constant 0 : i32
    return %c0_i32, %c0_i32_0 : i32, i32
  }
  func.func @transform_4(%arg0: i32) -> (i32, i32) {
    %c0_i32 = arith.constant 0 : i32
    %c0_i32_0 = arith.constant 0 : i32
    %c0_i32_1 = arith.constant 0 : i32
    return %c0_i32, %c0_i32_0 : i32, i32
  }
  func.func @transform_5(%arg0: i32) -> (i32, i32) {
    %c0_i32 = arith.constant 0 : i32
    %c0_i32_0 = arith.constant 0 : i32
    return %arg0, %c0_i32 : i32, i32
  }
}

</mosaic_0001>

<llo_original>
// kernel: linear_model_forward.1
$region0: #{linear_model_forward.1}
  #allocation0 [shape = 'u32[]', space=smem, size = 0x4, offset = 0x4, fixed_abs, tag = 'smem constant byte address 0x4 - core index']
  #allocation1 [shape = 'u32[144,128]{1,0:T(1,128)}', space=vmem, size = 0x12000, scoped, tag = 'internal scratch']
  %s0 = inlined_call_operand.vmem [shape: f32[8,192], index: 0, kind: input, shape index: {}]
  %s1 = inlined_call_operand.hbm [shape: f32[192,128], index: 1, kind: input, shape index: {}]
  %s2 = inlined_call_operand.vmem [shape: f32[1,128], index: 2, kind: input, shape index: {}]
  %s3 = inlined_call_operand.vmem [shape: f32[128,10], index: 3, kind: input, shape index: {}]
  %s4 = inlined_call_operand.vmem [shape: f32[1,10], index: 4, kind: input, shape index: {}]
  %s5 = inlined_call_operand.hbm [shape: f32[8,10], index: 5, kind: output, shape index: {}]
  %s6 = sld [smem:[#allocation0]]
  $region34: #{linear_model_forward.1} parent=0
    _
  %s8 = ssub.s32 1, %s6
  %s9 = scalar_select 0, %s8, %s6
  $region1: #{linear_model_forward.1} parent=0
    #allocation2 [shape = 'u8[98304]{0}', space=vmem, size = 0x18000, scoped, tag = 'input window, operand 1, single buffered']
    #allocation3 [shape = 's32[1]{0}', space=sflag, size = 0x4, scoped, tag = 'scoped memory for linear_model_forward.1']
    #allocation4 [shape = 's32[1]{0}', space=sflag, size = 0x4, scoped, tag = 'scoped memory for linear_model_forward.1']
    #allocation5 [shape = 'u8[4096]{0}', space=vmem, size = 0x1000, scoped, tag = 'output window, operand 0, single buffered']
    %10 = vsyncpa [#allocation3], 0
    %11 = vsyncpa [#allocation4], 0
    // Predicated region
    $region2: #{linear_model_forward.1} parent=1 // pred_check
      _
    $region3: #{linear_model_forward.1} parent=1 // pred_check_branch
      %13 = sbr.rel (0) target = $region5
    $region4: #{linear_model_forward.1} parent=1 // pred_region
      _
    $region5: #{linear_model_forward.1} parent=1 // pred_fallthru
      _
    // Predicated region
    $region6: #{linear_model_forward.1} parent=1 // pred_check
      _
    $region7: #{linear_model_forward.1} parent=1 // pred_check_branch
      %15 = sbr.rel (0) target = $region9
    $region8: #{linear_model_forward.1} parent=1 // pred_region
      %s17 = ssub.s32 3072, 3072
      %18 = vsyncadd [#allocation3], %s17
      %s19 = sshll.u32 [#allocation2], 4
      %s20 = int_to_ptr.vmem [resolvable:$true] %s19
      %25 = dma.hbm_to_vmem [thread:$0]  %s1, 3072, %s20, [#allocation3], 128, 128, 8
    $region9: #{linear_model_forward.1} parent=1 // pred_fallthru
      _
    // Predicated region
    $region10: #{linear_model_forward.1} parent=1 // pred_check
      _
    $region11: #{linear_model_forward.1} parent=1 // pred_check_branch
      %27 = sbr.rel (0) target = $region13
    $region12: #{linear_model_forward.1} parent=1 // pred_region
      _
    $region13: #{linear_model_forward.1} parent=1 // pred_fallthru
      _
    // Predicated region
    $region14: #{linear_model_forward.1} parent=1 // pred_check
      _
    $region15: #{linear_model_forward.1} parent=1 // pred_check_branch
      %29 = sbr.rel (0) target = $region17
    $region16: #{linear_model_forward.1} parent=1 // pred_region
      _
    $region17: #{linear_model_forward.1} parent=1 // pred_fallthru
      _
    // Predicated region
    $region18: #{linear_model_forward.1} parent=1 // pred_check
      _
    $region19: #{linear_model_forward.1} parent=1 // pred_check_branch
      %31 = sbr.rel (0) target = $region21
    $region20: #{linear_model_forward.1} parent=1 // pred_region
      _
    $region21: #{linear_model_forward.1} parent=1 // pred_fallthru
      _
    // Predicated region
    $region22: #{linear_model_forward.1} parent=1 // pred_check
      _
    $region23: #{linear_model_forward.1} parent=1 // pred_check_branch
      %33 = sbr.rel (0) target = $region25
    $region24: #{linear_model_forward.1} parent=1 // pred_region
      %34 = dma.done [#allocation3], 3072
    $region25: #{linear_model_forward.1} parent=1 // pred_fallthru
      _
    %v35 = vld [vmem:[%s0] sm:$0xff]
    %v36 = vld [vmem:[%s0 + $0x8] sm:$0xff]
    %v37 = vld [vmem:[#allocation2] sm:$0xff]
    %v38 = vld [vmem:[#allocation2 + $0x8] sm:$0xff]
    %v39 = vld [vmem:[#allocation2 + $0x10] sm:$0xff]
    %v40 = vld [vmem:[#allocation2 + $0x18] sm:$0xff]
    %v41 = vld [vmem:[#allocation2 + $0x20] sm:$0xff]
    %v42 = vld [vmem:[#allocation2 + $0x28] sm:$0xff]
    %v43 = vld [vmem:[#allocation2 + $0x30] sm:$0xff]
    %v44 = vld [vmem:[#allocation2 + $0x38] sm:$0xff]
    %v45 = vld [vmem:[#allocation2 + $0x40] sm:$0xff]
    %v46 = vld [vmem:[#allocation2 + $0x48] sm:$0xff]
    %v47 = vld [vmem:[#allocation2 + $0x50] sm:$0xff]
    %v48 = vld [vmem:[#allocation2 + $0x58] sm:$0xff]
    %v49 = vld [vmem:[#allocation2 + $0x60] sm:$0xff]
    %v50 = vld [vmem:[#allocation2 + $0x68] sm:$0xff]
    %v51 = vld [vmem:[#allocation2 + $0x70] sm:$0xff]
    %v52 = vld [vmem:[#allocation2 + $0x78] sm:$0xff]
    %v53 = vld [vmem:[#allocation2 + $0x80] sm:$0xff]
    %v54 = vld [vmem:[#allocation2 + $0x88] sm:$0xff]
    %v55 = vld [vmem:[#allocation2 + $0x90] sm:$0xff]
    %v56 = vld [vmem:[#allocation2 + $0x98] sm:$0xff]
    %v57 = vld [vmem:[#allocation2 + $0xa0] sm:$0xff]
    %v58 = vld [vmem:[#allocation2 + $0xa8] sm:$0xff]
    %v59 = vld [vmem:[#allocation2 + $0xb0] sm:$0xff]
    %v60 = vld [vmem:[#allocation2 + $0xb8] sm:$0xff]
    %v61 = vld [vmem:[%s3] sm:$0xff]
    %v62 = vld [vmem:[%s3 + $0x8] sm:$0xff]
    %v63 = vld [vmem:[%s3 + $0x10] sm:$0xff]
    %v64 = vld [vmem:[%s3 + $0x18] sm:$0xff]
    %v65 = vld [vmem:[%s3 + $0x20] sm:$0xff]
    %v66 = vld [vmem:[%s3 + $0x28] sm:$0xff]
    %v67 = vld [vmem:[%s3 + $0x30] sm:$0xff]
    %v68 = vld [vmem:[%s3 + $0x38] sm:$0xff]
    %v69 = vld [vmem:[%s3 + $0x40] sm:$0xff]
    %v70 = vld [vmem:[%s3 + $0x48] sm:$0xff]
    %v71 = vld [vmem:[%s3 + $0x50] sm:$0xff]
    %v72 = vld [vmem:[%s3 + $0x58] sm:$0xff]
    %v73 = vld [vmem:[%s3 + $0x60] sm:$0xff]
    %v74 = vld [vmem:[%s3 + $0x68] sm:$0xff]
    %v75 = vld [vmem:[%s3 + $0x70] sm:$0xff]
    %v76 = vld [vmem:[%s3 + $0x78] sm:$0xff]
    %v77 = vld [vmem:[%s2] sm:$0x1]
    %v79 = vlaneseq
    %v80 = vshrl.u32 %v79, 7
    %v81 = vsub.s32 0, %v80
    %v82 = vrot.slane %v77, %v81
    %vm84 = vcmask 523264
    %v86 = vsel %vm84, %v36, 0
    %88 = vmatprep.subr.mxu0 0.0
    %89 = vmatpush1.msra.mxu0 %v37
    %90 = vmatprep.subr.mxu0 0.0
    %91 = vmatpush1.msra.mxu0 %v38
    %92 = vmatprep.subr.mxu0 0.0
    %93 = vmatpush1.msra.mxu0 %v39
    %94 = vmatprep.subr.mxu0 0.0
    %95 = vmatpush1.msra.mxu0 %v40
    %96 = vmatprep.subr.mxu0 0.0
    %97 = vmatpush1.msra.mxu0 %v41
    %98 = vmatprep.subr.mxu0 0.0
    %99 = vmatpush1.msra.mxu0 %v42
    %100 = vmatprep.subr.mxu0 0.0
    %101 = vmatpush1.msra.mxu0 %v43
    %102 = vmatprep.subr.mxu0 0.0
    %103 = vmatpush1.msra.mxu0 %v44
    %104 = vmatprep.subr.mxu0 0.0
    %105 = vmatpush1.msra.mxu0 %v45
    %106 = vmatprep.subr.mxu0 0.0
    %107 = vmatpush1.msra.mxu0 %v46
    %108 = vmatprep.subr.mxu0 0.0
    %109 = vmatpush1.msra.mxu0 %v47
    %110 = vmatprep.subr.mxu0 0.0
    %111 = vmatpush1.msra.mxu0 %v48
    %112 = vmatprep.subr.mxu0 0.0
    %113 = vmatpush1.msra.mxu0 %v49
    %114 = vmatprep.subr.mxu0 0.0
    %115 = vmatpush1.msra.mxu0 %v50
    %116 = vmatprep.subr.mxu0 0.0
    %117 = vmatpush1.msra.mxu0 %v51
    %118 = vmatprep.subr.mxu0 0.0
    %119 = vmatpush1.msra.mxu0 %v52
    %120 = vmatprep.subr.mxu0 0.0
    %121 = vmatpush1.msra.mxu0 %v53
    %122 = vmatprep.subr.mxu0 0.0
    %123 = vmatpush1.msra.mxu0 %v54
    %124 = vmatprep.subr.mxu0 0.0
    %125 = vmatpush1.msra.mxu0 %v55
    %126 = vmatprep.subr.mxu0 0.0
    %127 = vmatpush1.msra.mxu0 %v56
    %128 = vmatprep.subr.mxu0 0.0
    %129 = vmatpush1.msra.mxu0 %v57
    %130 = vmatprep.subr.mxu0 0.0
    %131 = vmatpush1.msra.mxu0 %v58
    %132 = vmatprep.subr.mxu0 0.0
    %133 = vmatpush1.msra.mxu0 %v59
    %134 = vmatprep.subr.mxu0 0.0
    %135 = vmatpush1.msra.mxu0 %v60
    %136 = vmatprep.subr.mxu0 0.0
    %137 = vmatpush1.msra.mxu0 0.0
    %138 = vmatprep.subr.mxu0 0.0
    %139 = vmatpush1.msra.mxu0 0.0
    %140 = vmatprep.subr.mxu0 0.0
    %141 = vmatpush1.msra.mxu0 0.0
    %142 = vmatprep.subr.mxu0 0.0
    %143 = vmatpush1.msra.mxu0 0.0
    %144 = vmatprep.subr.mxu0 0.0
    %145 = vmatpush1.msra.mxu0 0.0
    %146 = vmatprep.subr.mxu0 0.0
    %147 = vmatpush1.msra.mxu0 0.0
    %148 = vmatprep.subr.mxu0 0.0
    %149 = vmatpush1.msra.mxu0 0.0
    %150 = vmatprep.subr.mxu0 0.0
    %151 = vmatpush1.msra.mxu0 0.0
    %152 = vmatprep.mubr.f32.mxu0 %v86
    %153 = vmatmul.mubr.f32.gmra.mrb[0].mxu0 %v35
    %v154 = vpop.f32.mrb[0].mxu0
    %v155 = vadd.f32 %v82, %v154
    %v156 = vpop.f32.mrb[0].mxu0
    %157 = vdwg.mxu0
    %v158 = vmax.f32 %v155, 0.0
    %v159 = vld [vmem:[%s4] sm:$0x1]
    %v161 = vlaneseq
    %v162 = vshrl.u32 %v161, 7
    %v163 = vsub.s32 0, %v162
    %v164 = vrot.slane %v159, %v163
    %166 = vmatprep.subr.mxu0 0.0
    %167 = vmatpush1.msra.mxu0 %v61
    %168 = vmatprep.subr.mxu0 0.0
    %169 = vmatpush1.msra.mxu0 %v62
    %170 = vmatprep.subr.mxu0 0.0
    %171 = vmatpush1.msra.mxu0 %v63
    %172 = vmatprep.subr.mxu0 0.0
    %173 = vmatpush1.msra.mxu0 %v64
    %174 = vmatprep.subr.mxu0 0.0
    %175 = vmatpush1.msra.mxu0 %v65
    %176 = vmatprep.subr.mxu0 0.0
    %177 = vmatpush1.msra.mxu0 %v66
    %178 = vmatprep.subr.mxu0 0.0
    %179 = vmatpush1.msra.mxu0 %v67
    %180 = vmatprep.subr.mxu0 0.0
    %181 = vmatpush1.msra.mxu0 %v68
    %182 = vmatprep.subr.mxu0 0.0
    %183 = vmatpush1.msra.mxu0 %v69
    %184 = vmatprep.subr.mxu0 0.0
    %185 = vmatpush1.msra.mxu0 %v70
    %186 = vmatprep.subr.mxu0 0.0
    %187 = vmatpush1.msra.mxu0 %v71
    %188 = vmatprep.subr.mxu0 0.0
    %189 = vmatpush1.msra.mxu0 %v72
    %190 = vmatprep.subr.mxu0 0.0
    %191 = vmatpush1.msra.mxu0 %v73
    %192 = vmatprep.subr.mxu0 0.0
    %193 = vmatpush1.msra.mxu0 %v74
    %194 = vmatprep.subr.mxu0 0.0
    %195 = vmatpush1.msra.mxu0 %v75
    %196 = vmatprep.subr.mxu0 0.0
    %197 = vmatpush1.msra.mxu0 %v76
    %198 = vmatprep.subr.mxu0 0.0
    %199 = vmatpush1.msra.mxu0 0.0
    %200 = vmatprep.subr.mxu0 0.0
    %201 = vmatpush1.msra.mxu0 0.0
    %202 = vmatprep.subr.mxu0 0.0
    %203 = vmatpush1.msra.mxu0 0.0
    %204 = vmatprep.subr.mxu0 0.0
    %205 = vmatpush1.msra.mxu0 0.0
    %206 = vmatprep.subr.mxu0 0.0
    %207 = vmatpush1.msra.mxu0 0.0
    %208 = vmatprep.subr.mxu0 0.0
    %209 = vmatpush1.msra.mxu0 0.0
    %210 = vmatprep.subr.mxu0 0.0
    %211 = vmatpush1.msra.mxu0 0.0
    %212 = vmatprep.subr.mxu0 0.0
    %213 = vmatpush1.msra.mxu0 0.0
    %214 = vmatprep.subr.mxu0 0.0
    %215 = vmatpush1.msra.mxu0 0.0
    %216 = vmatprep.subr.mxu0 0.0
    %217 = vmatpush1.msra.mxu0 0.0
    %218 = vmatprep.subr.mxu0 0.0
    %219 = vmatpush1.msra.mxu0 0.0
    %220 = vmatprep.subr.mxu0 0.0
    %221 = vmatpush1.msra.mxu0 0.0
    %222 = vmatprep.subr.mxu0 0.0
    %223 = vmatpush1.msra.mxu0 0.0
    %224 = vmatprep.subr.mxu0 0.0
    %225 = vmatpush1.msra.mxu0 0.0
    %226 = vmatprep.subr.mxu0 0.0
    %227 = vmatpush1.msra.mxu0 0.0
    %228 = vmatprep.subr.mxu0 0.0
    %229 = vmatpush1.msra.mxu0 0.0
    %230 = vmatprep.mubr.f32.mxu0 0.0
    %231 = vmatmul.mubr.f32.gmra.mrb[0].mxu0 %v158
    %v232 = vpop.f32.mrb[0].mxu0
    %v233 = vadd.f32 %v164, %v232
    %v234 = vpop.f32.mrb[0].mxu0
    %235 = vdwg.mxu0
    %vm236 = vcmask 80896
    %237 = vst.msk [vmem:[#allocation5] sm:$0xff] %vm236, %v233
    // Predicated region
    $region26: #{linear_model_forward.1} parent=1 // pred_check
      _
    $region27: #{linear_model_forward.1} parent=1 // pred_check_branch
      %239 = sbr.rel (0) target = $region29
    $region28: #{linear_model_forward.1} parent=1 // pred_region
      %s241 = ssub.s32 128, 128
      %242 = vsyncadd [#allocation4], %s241
      %s244 = sshll.u32 [#allocation5], 4
      %s245 = int_to_ptr.vmem [resolvable:$true] %s244
      %247 = dma.vmem_to_hbm [thread:$0]  %s245, 128, %s5, [#allocation4]
    $region29: #{linear_model_forward.1} parent=1 // pred_fallthru
      _
    // Predicated region
    $region30: #{linear_model_forward.1} parent=1 // pred_check
      _
    $region31: #{linear_model_forward.1} parent=1 // pred_check_branch
      %249 = sbr.rel (0) target = $region33
    $region32: #{linear_model_forward.1} parent=1 // pred_region
      %250 = dma.done [#allocation4], 128
    $region33: #{linear_model_forward.1} parent=1 // pred_fallthru
      _
    %251 = vsyncpa [#allocation3], 1
    %252 = vsyncpa [#allocation4], 1

</llo_original>
